<compile_context>
chip_gen: v6e
topology: v6e:2x2x1
jax: 0.10.0
libtpu: 0.0.40
codegen_flags: <defaults>
</compile_context>

<pallas_src>
import functools

import jax
import jax.numpy as jnp
from jax.experimental import pallas as pl
from jax.experimental.pallas import tpu as pltpu


def _triplet_kernel(a_ref, p_ref, n_ref, sum_ref, cnt_ref, *,
                    margin, semi_hard, batch_size, tile_b, needs_mask):
    """One batch tile: cosine sims (rsqrt form), relu, semi-hard filter, partial reductions."""
    i = pl.program_id(0)

    a = a_ref[...]
    p = p_ref[...]
    n = n_ref[...]

    f32 = jnp.float32
    eps = jnp.float32(1e-8)          # matches F.cosine_similarity default eps
    eps2 = eps * eps

    # Per-row reductions over the embedding (lane) axis, accumulated in f32.
    # (For bf16 inputs this upcasts per-reduction instead of keeping three full-tile
    #  f32 copies live; for f32 inputs the astype is a no-op.)
    def rowdot(x, y):
        return jnp.sum(x.astype(f32) * y.astype(f32), axis=-1, keepdims=True)  # (TB, 1)

    dot_ap = rowdot(a, p)
    dot_an = rowdot(a, n)
    sum_a2 = rowdot(a, a)
    sum_p2 = rowdot(p, p)
    sum_n2 = rowdot(n, n)

    # cos = dot / max(|a||x|, eps)  ==  dot * rsqrt(max(sum_a2*sum_x2, eps^2))
    cos_pos = dot_ap * jax.lax.rsqrt(jnp.maximum(sum_a2 * sum_p2, eps2))
    cos_neg = dot_an * jax.lax.rsqrt(jnp.maximum(sum_a2 * sum_n2, eps2))

    # dist_pos - dist_neg == (1 - cos_pos) - (1 - cos_neg) == cos_neg - cos_pos
    losses = jnp.maximum(cos_neg - cos_pos + jnp.float32(margin), 0.0)   # relu, (TB, 1)

    keep = losses > jnp.float32(semi_hard)                               # semi-hard filter
    if needs_mask:
        # Mask rows beyond the true batch size (only emitted for ragged edge tilings).
        row = jax.lax.broadcasted_iota(jnp.int32, losses.shape, 0) + i * tile_b
        keep = jnp.logical_and(keep, row < batch_size)

    filtered = jnp.where(keep, losses, 0.0)
    nonzero = jnp.logical_and(keep, losses > 0.0)                        # count_nonzero semantics

    # Per-tile scalar outputs via the SMEM scalar path.
    sum_ref[0, 0] = jnp.sum(filtered)
    cnt_ref[0, 0] = jnp.sum(nonzero.astype(jnp.int32))


def _vmem_plan():
    """Generation-aware (pipeline-buffer budget, vmem_limit_bytes)."""
    try:
        phys = pltpu.get_tpu_info().vmem_capacity_bytes
    except Exception:
        phys = 64 * 1024 * 1024  # be conservative if the query is unavailable
    if phys <= 64 * 1024 * 1024:
        # v7x-class: 64 MiB physical per TensorCore.  Keep the total footprint
        # (3 inputs x 2 buffers + compiler temporaries) well inside it.
        return 20 * 1024 * 1024, 32 * 1024 * 1024
    # v5e / v6e: 128 MiB physical.  Use a big buffer budget and raise the scoped limit.
    return 24 * 1024 * 1024, 48 * 1024 * 1024


def _choose_tile_rows(batch, dim, itemsize, buf_budget):
    """Largest batch tile s.t. 3 inputs x 2 pipeline buffers fit the VMEM buffer budget."""
    pack = 8 if itemsize >= 4 else (16 if itemsize == 2 else 32)  # sublane packing
    rows = buf_budget // (3 * 2 * dim * itemsize)
    rows = max(pack, (rows // pack) * pack)
    rows = min(rows, 16384)                       # high cap: small-D shapes get big tiles
    padded_batch = -(-batch // pack) * pack
    rows = min(rows, padded_batch)
    # Keep >= 2 grid steps when possible so the "parallel" batch axis can shard across
    # the 2 TensorCores on v7x (an extra ~0.35 us step is noise on v5e/v6e).
    if rows >= padded_batch and padded_batch >= 2 * pack:
        rows = max(pack, -(-(padded_batch // 2) // pack) * pack)
    return rows


def triplet_loss(anchor, positive, negative, *, margin, semi_hard,
                 size_average=True, tile_rows=None):
    """Pallas implementation of TripletLoss.forward.

    Returns (loss, num_nonzero):
      loss = sum(losses) / count_nonzero(losses)   if size_average
           = sum(losses)                           otherwise
    """
    assert anchor.shape == positive.shape == negative.shape
    assert anchor.ndim == 2

    B, D = anchor.shape
    itemsize = jnp.dtype(anchor.dtype).itemsize
    buf_budget, vmem_limit = _vmem_plan()
    tb = tile_rows if tile_rows is not None else _choose_tile_rows(B, D, itemsize, buf_budget)
    num_tiles = pl.cdiv(B, tb)

    kernel = functools.partial(
        _triplet_kernel,
        margin=float(margin), semi_hard=float(semi_hard),
        batch_size=B, tile_b=tb, needs_mask=(B % tb != 0))

    cost = pl.CostEstimate(
        flops=10 * B * D,            # 5 length-D row dots (2 flop/elem) per triplet row
        transcendentals=2 * B,       # 2 rsqrt per row
        bytes_accessed=3 * B * D * itemsize + 8 * num_tiles)

    part_sum, part_cnt = pl.pallas_call(
        kernel,
        out_shape=(
            jax.ShapeDtypeStruct((num_tiles, 1), jnp.float32),
            jax.ShapeDtypeStruct((num_tiles, 1), jnp.int32),
        ),
        grid=(num_tiles,),
        in_specs=[pl.BlockSpec((tb, D), lambda i: (i, 0)) for _ in range(3)],
        out_specs=(
            pl.BlockSpec((1, 1), lambda i: (i, 0),
                         memory_space=pltpu.MemorySpace.SMEM),
            pl.BlockSpec((1, 1), lambda i: (i, 0),
                         memory_space=pltpu.MemorySpace.SMEM),
        ),
        compiler_params=pltpu.CompilerParams(
            dimension_semantics=("parallel",),
            vmem_limit_bytes=vmem_limit),
        cost_estimate=cost,
    )(anchor, positive, negative)

    # Tiny final reduction across tiles in plain JAX.
    total = jnp.sum(part_sum)
    count = jnp.sum(part_cnt)              # exact int32 count
    # NOTE: if no triplet survives the semi-hard filter, count == 0 and loss is NaN,
    # matching the PyTorch reference behavior.
    loss = total / count.astype(jnp.float32) if size_average else total
    return loss, count


def _triplet_loss_ref(anchor, positive, negative, *, margin, semi_hard, size_average=True):
    """Pure-JAX reference for correctness checking."""
    eps = 1e-8

    def cos(x, y):
        num = jnp.sum(x * y, axis=-1)
        den = jnp.maximum(jnp.linalg.norm(x, axis=-1) * jnp.linalg.norm(y, axis=-1), eps)
        return num / den

    dp = 1.0 - cos(anchor, positive)
    dn = 1.0 - cos(anchor, negative)
    losses = jnp.maximum(dp - dn + margin, 0.0)
    losses = jnp.where(losses > semi_hard, losses, 0.0)
    cnt = jnp.sum(losses != 0.0)
    s = jnp.sum(losses)
    return (s / cnt if size_average else s), cnt.astype(jnp.int32)


if __name__ == "__main__":
    margin = 0.2
    semi_hard = 0.05

    keys = jax.random.split(jax.random.PRNGKey(0), 6)

    # 1) Small shape implied by the module: batch=8 embeddings of dim 32 (single tile).
    B, D = 8, 32
    anchor = jax.random.normal(keys[0], (B, D), dtype=jnp.float32)
    positive = jax.random.normal(keys[1], (B, D), dtype=jnp.float32)
    negative = jax.random.normal(keys[2], (B, D), dtype=jnp.float32)

    loss, count = triplet_loss(anchor, positive, negative,
                               margin=margin, semi_hard=semi_hard, size_average=True)
    loss = jax.block_until_ready(loss)
    count = jax.block_until_ready(count)

    ref_loss, ref_count = _triplet_loss_ref(anchor, positive, negative,
                                            margin=margin, semi_hard=semi_hard)
    assert int(count) == int(ref_count), (count, ref_count)
    assert jnp.allclose(loss, ref_loss, rtol=1e-4, atol=1e-6), (loss, ref_loss)

    # 2) Multi-tile + ragged edge tile + SMEM per-tile outputs (B not a multiple of tile).
    B2, D2 = 300, 64
    a2 = jax.random.normal(keys[3], (B2, D2), dtype=jnp.float32)
    p2 = jax.random.normal(keys[4], (B2, D2), dtype=jnp.float32)
    n2 = jax.random.normal(keys[5], (B2, D2), dtype=jnp.float32)

    loss2, count2 = triplet_loss(a2, p2, n2, margin=margin, semi_hard=semi_hard,
                                 size_average=True, tile_rows=64)
    loss2 = jax.block_until_ready(loss2)
    count2 = jax.block_until_ready(count2)

    ref_loss2, ref_count2 = _triplet_loss_ref(a2, p2, n2, margin=margin, semi_hard=semi_hard)
    assert int(count2) == int(ref_count2), (count2, ref_count2)
    assert jnp.allclose(loss2, ref_loss2, rtol=1e-4, atol=1e-6), (loss2, ref_loss2)

    print("KERNEL_OK")
</pallas_src>

<mosaic_0001>
module attributes {stable_mosaic.version = 11 : i64} {
  func.func @_triplet_kernel(%arg0: i32, %arg1: memref<8x32xf32, #tpu.memory_space<vmem>>, %arg2: memref<8x32xf32, #tpu.memory_space<vmem>>, %arg3: memref<8x32xf32, #tpu.memory_space<vmem>>, %arg4: memref<1x1xf32, #tpu.memory_space<smem>>, %arg5: memref<1x1xi32, #tpu.memory_space<smem>>) attributes {dimension_semantics = [#tpu.dimension_semantics<parallel>], iteration_bounds = array<i64: 1>, scalar_prefetch = 0 : i64, scratch_operands = 0 : i64, tpu.core_type = #tpu.core_type<tc>, window_params = [{transform_indices = @transform_0, window_bounds = array<i64: 8, 32>}, {transform_indices = @transform_1, window_bounds = array<i64: 8, 32>}, {transform_indices = @transform_2, window_bounds = array<i64: 8, 32>}, {transform_indices = @transform_3, window_bounds = array<i64: 1, 1>}, {transform_indices = @transform_4, window_bounds = array<i64: 1, 1>}]} {
    %c0 = arith.constant 0 : index
    %c0_0 = arith.constant 0 : index
    %0 = vector.load %arg1[%c0, %c0_0] : memref<8x32xf32, #tpu.memory_space<vmem>>, vector<8x32xf32>
    %c0_1 = arith.constant 0 : index
    %c0_2 = arith.constant 0 : index
    %1 = vector.load %arg2[%c0_1, %c0_2] : memref<8x32xf32, #tpu.memory_space<vmem>>, vector<8x32xf32>
    %c0_3 = arith.constant 0 : index
    %c0_4 = arith.constant 0 : index
    %2 = vector.load %arg3[%c0_3, %c0_4] : memref<8x32xf32, #tpu.memory_space<vmem>>, vector<8x32xf32>
    %cst = arith.constant 9.99999993E-9 : f32
    %cst_5 = arith.constant 9.99999993E-9 : f32
    %3 = arith.mulf %cst, %cst_5 : f32
    %4 = arith.mulf %0, %1 : vector<8x32xf32>
    %cst_6 = arith.constant dense<0.000000e+00> : vector<8xf32>
    %5 = vector.multi_reduction <add>, %4, %cst_6 [1] : vector<8x32xf32> to vector<8xf32>
    %6 = vector.shape_cast %5 : vector<8xf32> to vector<8x1xf32>
    %7 = arith.mulf %0, %2 : vector<8x32xf32>
    %cst_7 = arith.constant dense<0.000000e+00> : vector<8xf32>
    %8 = vector.multi_reduction <add>, %7, %cst_7 [1] : vector<8x32xf32> to vector<8xf32>
    %9 = vector.shape_cast %8 : vector<8xf32> to vector<8x1xf32>
    %10 = arith.mulf %0, %0 : vector<8x32xf32>
    %cst_8 = arith.constant dense<0.000000e+00> : vector<8xf32>
    %11 = vector.multi_reduction <add>, %10, %cst_8 [1] : vector<8x32xf32> to vector<8xf32>
    %12 = vector.shape_cast %11 : vector<8xf32> to vector<8x1xf32>
    %13 = arith.mulf %1, %1 : vector<8x32xf32>
    %cst_9 = arith.constant dense<0.000000e+00> : vector<8xf32>
    %14 = vector.multi_reduction <add>, %13, %cst_9 [1] : vector<8x32xf32> to vector<8xf32>
    %15 = vector.shape_cast %14 : vector<8xf32> to vector<8x1xf32>
    %16 = arith.mulf %2, %2 : vector<8x32xf32>
    %cst_10 = arith.constant dense<0.000000e+00> : vector<8xf32>
    %17 = vector.multi_reduction <add>, %16, %cst_10 [1] : vector<8x32xf32> to vector<8xf32>
    %18 = vector.shape_cast %17 : vector<8xf32> to vector<8x1xf32>
    %19 = arith.mulf %12, %15 : vector<8x1xf32>
    %20 = vector.broadcast %3 : f32 to vector<8x1xf32>
    %21 = arith.maximumf %19, %20 : vector<8x1xf32>
    %22 = math.rsqrt %21 : vector<8x1xf32>
    %23 = arith.mulf %6, %22 : vector<8x1xf32>
    %24 = arith.mulf %12, %18 : vector<8x1xf32>
    %25 = vector.broadcast %3 : f32 to vector<8x1xf32>
    %26 = arith.maximumf %24, %25 : vector<8x1xf32>
    %27 = math.rsqrt %26 : vector<8x1xf32>
    %28 = arith.mulf %9, %27 : vector<8x1xf32>
    %29 = arith.subf %28, %23 : vector<8x1xf32>
    %cst_11 = arith.constant 2.000000e-01 : f32
    %30 = vector.broadcast %cst_11 : f32 to vector<8x1xf32>
    %31 = arith.addf %29, %30 : vector<8x1xf32>
    %cst_12 = arith.constant 0.000000e+00 : f32
    %32 = vector.broadcast %cst_12 : f32 to vector<8x1xf32>
    %33 = arith.maximumf %31, %32 : vector<8x1xf32>
    %cst_13 = arith.constant 5.000000e-02 : f32
    %34 = vector.broadcast %cst_13 : f32 to vector<8x1xf32>
    %35 = arith.cmpf ogt, %33, %34 : vector<8x1xf32>
    %cst_14 = arith.constant 0.000000e+00 : f32
    %36 = vector.broadcast %cst_14 : f32 to vector<8x1xf32>
    %37 = arith.select %35, %33, %36 : vector<8x1xi1>, vector<8x1xf32>
    %cst_15 = arith.constant 0.000000e+00 : f32
    %38 = vector.broadcast %cst_15 : f32 to vector<8x1xf32>
    %39 = arith.cmpf ogt, %33, %38 : vector<8x1xf32>
    %40 = arith.andi %35, %39 : vector<8x1xi1>
    %41 = vector.shape_cast %37 : vector<8x1xf32> to vector<1x8x1xf32>
    %cst_16 = arith.constant dense<0.000000e+00> : vector<1xf32>
    %42 = vector.multi_reduction <add>, %41, %cst_16 [1, 2] : vector<1x8x1xf32> to vector<1xf32>
    %43 = vector.shape_cast %42 : vector<1xf32> to vector<1x1x1xf32>
    %44 = vector.extract %43[0, 0, 0] : f32 from vector<1x1x1xf32>
    %c0_17 = arith.constant 0 : index
    %c0_18 = arith.constant 0 : index
    %45 = memref.load %arg4[%c0_17, %c0_18] : memref<1x1xf32, #tpu.memory_space<smem>>
    memref.store %44, %arg4[%c0_17, %c0_18] : memref<1x1xf32, #tpu.memory_space<smem>>
    %46 = arith.extui %40 : vector<8x1xi1> to vector<8x1xi32>
    %47 = vector.shape_cast %46 : vector<8x1xi32> to vector<1x8x1xi32>
    %cst_19 = arith.constant dense<0> : vector<1xi32>
    %48 = vector.multi_reduction <add>, %47, %cst_19 [1, 2] : vector<1x8x1xi32> to vector<1xi32>
    %49 = vector.shape_cast %48 : vector<1xi32> to vector<1x1x1xi32>
    %50 = vector.extract %49[0, 0, 0] : i32 from vector<1x1x1xi32>
    %c0_20 = arith.constant 0 : index
    %c0_21 = arith.constant 0 : index
    %51 = memref.load %arg5[%c0_20, %c0_21] : memref<1x1xi32, #tpu.memory_space<smem>>
    memref.store %50, %arg5[%c0_20, %c0_21] : memref<1x1xi32, #tpu.memory_space<smem>>
    return
  }
  func.func @transform_0(%arg0: i32) -> (i32, i32) {
    %c0_i32 = arith.constant 0 : i32
    %c0_i32_0 = arith.constant 0 : i32
    return %arg0, %c0_i32 : i32, i32
  }
  func.func @transform_1(%arg0: i32) -> (i32, i32) {
    %c0_i32 = arith.constant 0 : i32
    %c0_i32_0 = arith.constant 0 : i32
    return %arg0, %c0_i32 : i32, i32
  }
  func.func @transform_2(%arg0: i32) -> (i32, i32) {
    %c0_i32 = arith.constant 0 : i32
    %c0_i32_0 = arith.constant 0 : i32
    return %arg0, %c0_i32 : i32, i32
  }
  func.func @transform_3(%arg0: i32) -> (i32, i32) {
    %c0_i32 = arith.constant 0 : i32
    %c0_i32_0 = arith.constant 0 : i32
    return %arg0, %c0_i32 : i32, i32
  }
  func.func @transform_4(%arg0: i32) -> (i32, i32) {
    %c0_i32 = arith.constant 0 : i32
    %c0_i32_0 = arith.constant 0 : i32
    return %arg0, %c0_i32 : i32, i32
  }
}

</mosaic_0001>

<llo_original>
// kernel: tpu_custom_call.1
$region0: #{tpu_custom_call.1}
  #allocation0 [shape = 'u32[]', space=smem, size = 0x4, offset = 0x4, fixed_abs, tag = 'smem constant byte address 0x4 - core index']
  #allocation1 [shape = 'u32[144,128]{1,0:T(1,128)}', space=vmem, size = 0x12000, scoped, tag = 'internal scratch']
  %s0 = inlined_call_operand.hbm [shape: f32[8,32], index: 0, kind: input, shape index: {}]
  %s1 = inlined_call_operand.hbm [shape: f32[8,32], index: 1, kind: input, shape index: {}]
  %s2 = inlined_call_operand.hbm [shape: f32[8,32], index: 2, kind: input, shape index: {}]
  %s3 = inlined_call_operand.hbm [shape: f32[1,1], index: 3, kind: output, shape index: {0}]
  %s4 = inlined_call_operand.hbm [shape: s32[1,1], index: 4, kind: output, shape index: {1}]
  %5 = xla_tuple %s3, %s4
  %s6 = sld [smem:[#allocation0]]
  $region42: #{tpu_custom_call.1} parent=0
    _
  %s8 = ssub.s32 1, %s6
  %s9 = scalar_select 0, %s8, %s6
  $region1: #{tpu_custom_call.1} parent=0
    #allocation2 [shape = 'u8[4096]{0}', space=vmem, size = 0x1000, scoped, tag = 'input window, operand 0, single buffered']
    #allocation3 [shape = 's32[1]{0}', space=sflag, size = 0x4, scoped, tag = 'scoped memory for tpu_custom_call.1']
    #allocation4 [shape = 's32[1]{0}', space=sflag, size = 0x4, scoped, tag = 'scoped memory for tpu_custom_call.1']
    #allocation5 [shape = 'u8[4096]{0}', space=vmem, size = 0x1000, scoped, tag = 'input window, operand 1, single buffered']
    #allocation6 [shape = 's32[1]{0}', space=sflag, size = 0x4, scoped, tag = 'scoped memory for tpu_custom_call.1']
    #allocation7 [shape = 'u8[4096]{0}', space=vmem, size = 0x1000, scoped, tag = 'input window, operand 2, single buffered']
    #allocation8 [shape = 'u8[512]{0}', space=smem, size = 0x200, scoped, tag = 'output window, operand 0, single buffered']
    #allocation9 [shape = 'u8[512]{0}', space=smem, size = 0x200, scoped, tag = 'output window, operand 1, single buffered']
    #allocation10 [shape = 's32[1]{0}', space=sflag, size = 0x4, scoped, tag = 'scoped memory for tpu_custom_call.1']
    %10 = vsyncpa [#allocation3], 0
    %11 = vsyncpa [#allocation6], 0
    %12 = vsyncpa [#allocation4], 0
    %13 = vsyncpa [#allocation10], 0
    // Predicated region
    $region2: #{tpu_custom_call.1} parent=1 // pred_check
      _
    $region3: #{tpu_custom_call.1} parent=1 // pred_check_branch
      %15 = sbr.rel (0) target = $region5
    $region4: #{tpu_custom_call.1} parent=1 // pred_region
      %s17 = ssub.s32 128, 128
      %18 = vsyncadd [#allocation3], %s17
      %s20 = sshll.u32 [#allocation2], 4
      %s21 = int_to_ptr.vmem [resolvable:$true] %s20
      %23 = dma.hbm_to_vmem [thread:$0]  %s0, 128, %s21, [#allocation3]
    $region5: #{tpu_custom_call.1} parent=1 // pred_fallthru
      _
    // Predicated region
    $region6: #{tpu_custom_call.1} parent=1 // pred_check
      _
    $region7: #{tpu_custom_call.1} parent=1 // pred_check_branch
      %25 = sbr.rel (0) target = $region9
    $region8: #{tpu_custom_call.1} parent=1 // pred_region
      %s27 = ssub.s32 128, 128
      %28 = vsyncadd [#allocation6], %s27
      %s30 = sshll.u32 [#allocation5], 4
      %s31 = int_to_ptr.vmem [resolvable:$true] %s30
      %33 = dma.hbm_to_vmem [thread:$0]  %s1, 128, %s31, [#allocation6]
    $region9: #{tpu_custom_call.1} parent=1 // pred_fallthru
      _
    // Predicated region
    $region10: #{tpu_custom_call.1} parent=1 // pred_check
      _
    $region11: #{tpu_custom_call.1} parent=1 // pred_check_branch
      %35 = sbr.rel (0) target = $region13
    $region12: #{tpu_custom_call.1} parent=1 // pred_region
      %s37 = ssub.s32 128, 128
      %38 = vsyncadd [#allocation6], %s37
      %s40 = sshll.u32 [#allocation7], 4
      %s41 = int_to_ptr.vmem [resolvable:$true] %s40
      %43 = dma.hbm_to_vmem [thread:$0]  %s2, 128, %s41, [#allocation6]
    $region13: #{tpu_custom_call.1} parent=1 // pred_fallthru
      _
    // Predicated region
    $region14: #{tpu_custom_call.1} parent=1 // pred_check
      _
    $region15: #{tpu_custom_call.1} parent=1 // pred_check_branch
      %45 = sbr.rel (0) target = $region17
    $region16: #{tpu_custom_call.1} parent=1 // pred_region
      %46 = dma.done [#allocation3], 128
    $region17: #{tpu_custom_call.1} parent=1 // pred_fallthru
      _
    // Predicated region
    $region18: #{tpu_custom_call.1} parent=1 // pred_check
      _
    $region19: #{tpu_custom_call.1} parent=1 // pred_check_branch
      %48 = sbr.rel (0) target = $region21
    $region20: #{tpu_custom_call.1} parent=1 // pred_region
      %49 = dma.done [#allocation6], 128
    $region21: #{tpu_custom_call.1} parent=1 // pred_fallthru
      _
    // Predicated region
    $region22: #{tpu_custom_call.1} parent=1 // pred_check
      _
    $region23: #{tpu_custom_call.1} parent=1 // pred_check_branch
      %51 = sbr.rel (0) target = $region25
    $region24: #{tpu_custom_call.1} parent=1 // pred_region
      %52 = dma.done [#allocation6], 128
    $region25: #{tpu_custom_call.1} parent=1 // pred_fallthru
      _
    %v53 = vld [vmem:[#allocation2] sm:$0xff]
    %v54 = vld [vmem:[#allocation5] sm:$0xff]
    %v55 = vld [vmem:[#allocation7] sm:$0xff]
    %v56 = vmul.f32 %v53, %v54
    %vm57 = vcmask 261120
    %v58 = vsel %vm57, %v56, 0.0
    %59 = vadd.xlane.f32.xlu0 %v58
    %v60 = vpop.xlane.xlu0 %59
    %v61 = vmul.f32 %v53, %v55
    %v62 = vsel %vm57, %v61, 0.0
    %63 = vadd.xlane.f32.xlu0 %v62
    %v64 = vpop.xlane.xlu0 %63
    %v65 = vmul.f32 %v53, %v53
    %v66 = vsel %vm57, %v65, 0.0
    %67 = vadd.xlane.f32.xlu0 %v66
    %v68 = vpop.xlane.xlu0 %67
    %v69 = vmul.f32 %v54, %v54
    %v70 = vsel %vm57, %v69, 0.0
    %71 = vadd.xlane.f32.xlu0 %v70
    %v72 = vpop.xlane.xlu0 %71
    %v73 = vmul.f32 %v55, %v55
    %v74 = vsel %vm57, %v73, 0.0
    %75 = vadd.xlane.f32.xlu0 %v74
    %v76 = vpop.xlane.xlu0 %75
    %v77 = vmul.f32 %v68, %v72
    %v78 = vmax.f32 %v77, 1e-16
    %v79 = vrsqrt.pop %v78
    %v80 = vmul.f32 %v60, %v79
    %v81 = vmul.f32 %v68, %v76
    %v82 = vmax.f32 %v81, 1e-16
    %v83 = vrsqrt.pop %v82
    %v84 = vmul.f32 %v64, %v83
    %v85 = vsub.f32 %v84, %v80
    %v86 = vadd.f32 %v85, 0.2
    %v87 = vmax.f32 %v86, 0.0
    %vm88 = vcmp.gt.f32.partialorder %v87, 0.05
    %v89 = vsel %vm88, %v87, 0.0
    %vm90 = vcmp.gt.f32.partialorder %v87, 0.0
    %vm91 = vmand %vm88, %vm90
    %vm92 = vcmask 7168
    %v93 = vsel %vm92, %v89, 0.0
    %94 = vadd.xlane.f32.xlu0 %v93
    %v95 = vpop.xlane.xlu0 %94
    %v96 = vrot.slane %v95, 4
    %v97 = vadd.f32 %v95, %v96
    %v98 = vrot.slane %v97, 2
    %v99 = vadd.f32 %v97, %v98
    %v100 = vrot.slane %v99, 1
    %v101 = vadd.f32 %v99, %v100
    %s102 = vtos %v101
    %s103 = scalar_lea.smem [#allocation8], 0
    %104 = sst [smem:[%s103]] %s102
    %v105 = vsel %vm91, 1, 0
    %v106 = vrot.slane %v105, 4
    %v107 = vadd.s32 %v105, %v106
    %v108 = vrot.slane %v107, 2
    %v109 = vadd.s32 %v107, %v108
    %v110 = vrot.slane %v109, 1
    %v111 = vadd.s32 %v109, %v110
    %s112 = vtos %v111
    %s113 = scalar_lea.smem [#allocation9], 0
    %114 = sst [smem:[%s113]] %s112
    // Predicated region
    $region26: #{tpu_custom_call.1} parent=1 // pred_check
      _
    $region27: #{tpu_custom_call.1} parent=1 // pred_check_branch
      %116 = sbr.rel (0) target = $region29
    $region28: #{tpu_custom_call.1} parent=1 // pred_region
      %s118 = ssub.s32 16, 16
      %119 = vsyncadd [#allocation4], %s118
      %122 = dma.smem_to_hbm [#allocation8], 16, %s3, [#allocation4]
    $region29: #{tpu_custom_call.1} parent=1 // pred_fallthru
      _
    // Predicated region
    $region30: #{tpu_custom_call.1} parent=1 // pred_check
      _
    $region31: #{tpu_custom_call.1} parent=1 // pred_check_branch
      %124 = sbr.rel (0) target = $region33
    $region32: #{tpu_custom_call.1} parent=1 // pred_region
      %s126 = ssub.s32 16, 16
      %127 = vsyncadd [#allocation10], %s126
      %130 = dma.smem_to_hbm [#allocation9], 16, %s4, [#allocation10]
    $region33: #{tpu_custom_call.1} parent=1 // pred_fallthru
      _
    // Predicated region
    $region34: #{tpu_custom_call.1} parent=1 // pred_check
      _
    $region35: #{tpu_custom_call.1} parent=1 // pred_check_branch
      %132 = sbr.rel (0) target = $region37
    $region36: #{tpu_custom_call.1} parent=1 // pred_region
      %133 = dma.done [#allocation4], 16
    $region37: #{tpu_custom_call.1} parent=1 // pred_fallthru
      _
    // Predicated region
    $region38: #{tpu_custom_call.1} parent=1 // pred_check
      _
    $region39: #{tpu_custom_call.1} parent=1 // pred_check_branch
      %135 = sbr.rel (0) target = $region41
    $region40: #{tpu_custom_call.1} parent=1 // pred_region
      %136 = dma.done [#allocation10], 16
    $region41: #{tpu_custom_call.1} parent=1 // pred_fallthru
      _
    %137 = sfence
    %138 = vsyncpa [#allocation3], 1
    %139 = vsyncpa [#allocation6], 1
    %140 = vsyncpa [#allocation4], 1
    %141 = vsyncpa [#allocation10], 1

</llo_original>
